<compile_context>
chip_gen: v7x
topology: tpu7x:2x2x1
jax: 0.10.0
libtpu: 0.0.40
codegen_flags: <defaults>
</compile_context>

<pallas_src>
import itertools
import numpy as np
import jax
import jax.numpy as jnp
from jax import lax
from jax.experimental import pallas as pl
from jax.experimental.pallas import tpu as pltpu

H = 4  # hidden width of every selection network (nn.Linear(..., 4))


def _enumerate_combos(length):
    """(C, L) matrix of all 2**L bit patterns; row i = binary of i, MSB first."""
    idx = np.arange(2 ** length, dtype=np.int64)
    shifts = np.arange(length - 1, -1, -1, dtype=np.int64)
    return ((idx[:, None] >> shifts[None, :]) & 1).astype(np.float32)


# ----------------------------- Pallas kernel --------------------------------
def _make_fused_kernel(segments, width):
    """Gridless fused kernel for both selection networks.

    Refs:
      steps_ref : SMEM int32 (n_total, 2)  -- per step: [key candidate index, #ones]
      p0_ref    : SMEM f32   (1, 1)        -- initial carried probability
      const_ref : VMEM f32   (8, width)    -- packed constants per segment:
                    rows 0:4, lanes [zoff:zoff+C]  = Z0 = b1 + W1[:,1:] @ bits
                    rows 0:4, lane  aux            = W1[:, 0]   (probability column)
                    rows 0:4, lane  aux+1          = W2
                    row  4,   lane  aux            = b2
      out_ref   : VMEM f32   (8, width)    -- packed outputs:
                    rows 0:4, lanes [off:off+d]    = W1 grad
                    rows 0:4, lane  off+d          = b1 grad
                    rows 0:4, lane  off+d+1        = W2 grad
                    row  4,   lane  off            = b2 grad
                    row  5,   lanes [0:n_total]    = per-step probabilities
    """
    def kernel(steps_ref, p0_ref, const_ref, out_ref):
        out_ref[...] = jnp.zeros((8, width), jnp.float32)

        p = p0_ref[0, 0]          # carried probability (serial recurrence, in vregs)
        probs = []                # (1, 1) probabilities, written once at the end
        row = 0                   # static global step index

        for seg in segments:
            nb, c, d = seg['n_bits'], seg['c'], seg['d']
            zoff, aux, ooff = seg['zoff'], seg['aux'], seg['out_off']

            z0 = const_ref[0:H, zoff:zoff + c]        # (H, C) static part of layer 1
            w1p = const_ref[0:H, aux:aux + 1]         # (H, 1) probability column of W1
            w2 = const_ref[0:H, aux + 1:aux + 2]      # (H, 1)
            b2 = const_ref[4:5, aux:aux + 1]          # (1, 1)

            # candidate index / popcount rows, hoisted out of the step loop
            lane = lax.broadcasted_iota(jnp.int32, (1, c), 1)
            ones = jnp.zeros((1, c), jnp.int32)
            for b in range(nb):
                ones = ones + ((lane >> b) & 1)

            coeff_acc = jnp.zeros((1, c), jnp.float32)
            ch_acc = jnp.zeros((H, c), jnp.float32)
            cda_acc = jnp.zeros((H, c), jnp.float32)
            pcda_acc = jnp.zeros((H, c), jnp.float32)

            for _ in range(seg['n']):
                key_idx = steps_ref[row, 0]           # SMEM scalars
                n_ones = steps_ref[row, 1]
                row += 1

                # masks rebuilt in-kernel: two VPU compares
                valid = jnp.where(ones == n_ones, 1.0, 0.0)       # (1, C)
                key = jnp.where(lane == key_idx, 1.0, 0.0)        # (1, C)

                # forward for every candidate (candidates on the lane axis)
                z = z0 + w1p * p                                   # (H, C)
                h = jnp.tanh(z)                                    # (H, C)  EUP
                out = b2 + jnp.sum(w2 * h, axis=0, keepdims=True)  # (1, C)
                e = jnp.exp(out)                                   # (1, C)  EUP

                # softmax restricted to candidates with the chunk's #ones
                # (raw exp, matching the reference; exact division so the
                #  carried p does not accumulate approx-reciprocal error)
                out_sum = jnp.sum(valid * e, axis=1, keepdims=True)   # (1, 1)
                key_e = jnp.sum(key * e, axis=1, keepdims=True)       # (1, 1)
                inv_sum = 1.0 / out_sum
                prob = key_e * inv_sum

                # gradient accumulation (full-width vregs only; reductions
                # are deferred to the per-segment epilogue)
                coeff = key - inv_sum * (valid * out)              # (1, C)
                da = w2 * (1.0 - h * h)                            # (H, C)
                cda = coeff * da                                   # (H, C)
                coeff_acc = coeff_acc + coeff
                ch_acc = ch_acc + coeff * h
                cda_acc = cda_acc + cda
                pcda_acc = pcda_acc + p * cda                      # x[0, c] == p

                probs.append(prob)
                p = prob                                           # serial recurrence

            # ---- per-segment epilogue: the only gradient lane-reduces ----
            out_ref[0:H, ooff:ooff + 1] = jnp.sum(pcda_acc, axis=1, keepdims=True)
            for dd in range(1, d):
                bit = jnp.where(((lane >> (nb - dd)) & 1) > 0, 1.0, 0.0)   # combos row
                out_ref[0:H, ooff + dd:ooff + dd + 1] = jnp.sum(
                    cda_acc * bit, axis=1, keepdims=True)
            out_ref[0:H, ooff + d:ooff + d + 1] = jnp.sum(cda_acc, axis=1, keepdims=True)
            out_ref[0:H, ooff + d + 1:ooff + d + 2] = jnp.sum(ch_acc, axis=1, keepdims=True)
            out_ref[4:5, ooff:ooff + 1] = jnp.sum(coeff_acc, axis=1, keepdims=True)

        # probability row assembled via one-hot lane selects, single row store
        lane_w = lax.broadcasted_iota(jnp.int32, (1, width), 1)
        prob_row = jnp.zeros((1, width), jnp.float32)
        for col, pv in enumerate(probs):
            prob_row = prob_row + jnp.where(lane_w == col, pv, 0.0)
        out_ref[5:6, :] = prob_row

    return kernel


# ----------------------------- model wrapper ---------------------------------
class PallasModel:
    """JAX/Pallas port of rl_nldr Model.forward (net2 / net3 path)."""

    def __init__(self, library_len, num_library_fns, org_dim, selection_length, key):
        self.selection_length = selection_length
        self.num_networks_2 = org_dim * num_library_fns % selection_length
        self.num_networks_3 = (org_dim * num_library_fns // selection_length
                               - self.num_networks_2)

        def linear_init(kw, kb, fan_in, fan_out):
            bound = 1.0 / np.sqrt(fan_in)
            w = jax.random.uniform(kw, (fan_out, fan_in), jnp.float32, -bound, bound)
            b = jax.random.uniform(kb, (fan_out,), jnp.float32, -bound, bound)
            return np.asarray(w, np.float32), np.asarray(b, np.float32)

        ks = jax.random.split(key, 8)
        d2 = selection_length + 2          # prob + (sl + 1) bits
        d3 = selection_length + 1          # prob + sl bits
        w1_2, b1_2 = linear_init(ks[0], ks[1], d2, H)
        w2_2, b2_2 = linear_init(ks[2], ks[3], H, 1)
        w1_3, b1_3 = linear_init(ks[4], ks[5], d3, H)
        w2_3, b2_3 = linear_init(ks[6], ks[7], H, 1)
        self.net2 = (w1_2, b1_2, w2_2, b2_2)
        self.net3 = (w1_3, b1_3, w2_3, b2_3)

        self._segments, self._seg_params = [], []
        if self.num_networks_2:
            self._segments.append({'n': self.num_networks_2,
                                   'n_bits': selection_length + 1,
                                   'c': 2 ** (selection_length + 1),
                                   'd': selection_length + 2})
            self._seg_params.append(self.net2)
        if self.num_networks_3:
            self._segments.append({'n': self.num_networks_3,
                                   'n_bits': selection_length,
                                   'c': 2 ** selection_length,
                                   'd': selection_length + 1})
            self._seg_params.append(self.net3)

        self._fused = None
        if not self._segments:
            return

        self._n_total = sum(s['n'] for s in self._segments)

        # static lane layout for the packed constant / output tiles
        zoff = 0
        for seg in self._segments:
            seg['zoff'] = zoff
            zoff += seg['c']
        aux = zoff
        for seg in self._segments:
            seg['aux'] = aux
            aux += 2
        ooff = 0
        for seg in self._segments:
            seg['out_off'] = ooff
            ooff += seg['d'] + 2
        lanes = max(aux, ooff, self._n_total)
        width = 128 * ((lanes + 127) // 128)
        self._width = width

        # hoisted constants: Z0 (static half of layer 1) + weights, built once
        const = np.zeros((8, width), np.float32)
        for seg, (w1, b1, w2, b2) in zip(self._segments, self._seg_params):
            bits = _enumerate_combos(seg['n_bits'])                     # (C, nb)
            z0 = b1.reshape(H, 1) + w1[:, 1:] @ bits.T                  # (H, C)
            const[0:H, seg['zoff']:seg['zoff'] + seg['c']] = z0
            const[0:H, seg['aux']] = w1[:, 0]
            const[0:H, seg['aux'] + 1] = w2.reshape(H)
            const[4, seg['aux']] = b2[0]
        self._const = jnp.asarray(const)

        self._fused = jax.jit(pl.pallas_call(
            _make_fused_kernel(self._segments, width),
            out_shape=jax.ShapeDtypeStruct((8, width), jnp.float32),
            in_specs=[pl.BlockSpec(memory_space=pltpu.MemorySpace.SMEM),   # step table
                      pl.BlockSpec(memory_space=pltpu.MemorySpace.SMEM),   # p0
                      pl.BlockSpec(memory_space=pltpu.MemorySpace.VMEM)],  # constants
            out_specs=pl.BlockSpec(memory_space=pltpu.MemorySpace.VMEM)))

    def forward(self, x):
        prob_arr = list(x['probability_lib_selection'])
        if self._fused is None:
            return {'sample_probability_array': prob_arr,
                    'grads_network_2': None, 'grads_network_3': None}

        # tiny per-call host work: (n_total, 2) int32 step table (key idx, #ones)
        sel = np.asarray(x['selection_arr'], np.float32)
        steps = np.zeros((self._n_total, 2), np.int32)
        ind = row = 0
        for seg in self._segments:
            n, nb = seg['n'], seg['n_bits']
            blk = np.round(sel[ind:ind + n * nb]).astype(np.int64).reshape(n, nb)
            ind += n * nb
            pow2 = 2 ** np.arange(nb - 1, -1, -1)
            steps[row:row + n, 0] = blk @ pow2
            steps[row:row + n, 1] = blk.sum(axis=1)
            row += n

        p0 = jnp.asarray(np.array([[prob_arr[-1]]], np.float32))
        out_dev = self._fused(jnp.asarray(steps), p0, self._const)   # ONE kernel
        jax.block_until_ready(out_dev)
        out = np.asarray(out_dev)                                    # single D2H copy

        prob_arr.extend(float(v) for v in out[5, :self._n_total])

        seg_grads = []
        for seg in self._segments:
            off, d = seg['out_off'], seg['d']
            seg_grads.append([out[0:H, off:off + d],                 # W1 grad (H, D)
                              out[0:H, off + d],                     # b1 grad (H,)
                              out[0:H, off + d + 1].reshape(1, H),   # W2 grad (1, H)
                              out[4, off:off + 1]])                  # b2 grad (1,)

        grads2 = grads3 = None
        gi = 0
        if self.num_networks_2:
            grads2 = seg_grads[gi]
            gi += 1
        if self.num_networks_3:
            grads3 = seg_grads[gi]
        return {'sample_probability_array': prob_arr,
                'grads_network_2': grads2,
                'grads_network_3': grads3}


# ----------------------------- pure-numpy reference -------------------------
def _ref_step(p, bits, w1, b1, w2, b2):
    length = bits.shape[0]
    h_dim = w1.shape[0]
    choices = int(round(float(bits.sum())))
    combos = [cb for cb in itertools.product([0, 1], repeat=length) if sum(cb) == choices]
    outs, grads = [], []
    for cb in combos:
        xv = np.concatenate([[np.float32(p)], np.array(cb, np.float32)]).astype(np.float32)
        z = w1 @ xv + b1
        hh = np.tanh(z)
        out = (w2 @ hh + b2).item()
        aa = w2[0] * (1.0 - hh * hh)
        grads.append((np.outer(aa, xv), aa.copy(), hh.reshape(1, h_dim).copy(),
                      np.ones((1,), np.float32)))
        outs.append(out)
    outs = np.array(outs, np.float64)
    exps = np.exp(outs)
    out_sum = exps.sum()
    grad_sum = [np.zeros_like(g, dtype=np.float64) for g in grads[0]]
    for o, g in zip(outs, grads):
        for acc, t in zip(grad_sum, g):
            acc += o * t
    key = combos.index(tuple(int(round(float(b))) for b in bits))
    prob = exps[key] / out_sum
    gk = [grads[key][j] - grad_sum[j] / out_sum for j in range(4)]
    return float(prob), gk


def reference_forward(model, x):
    prob_arr = list(x['probability_lib_selection'])
    sel = np.asarray(x['selection_arr'], np.float32)
    sl = model.selection_length
    g2 = [np.zeros((H, sl + 2)), np.zeros(H), np.zeros((1, H)), np.zeros(1)] \
        if model.num_networks_2 else None
    g3 = [np.zeros((H, sl + 1)), np.zeros(H), np.zeros((1, H)), np.zeros(1)] \
        if model.num_networks_3 else None
    ind = 0
    for _ in range(model.num_networks_2):
        prob, gk = _ref_step(prob_arr[-1], sel[ind:ind + sl + 1], *model.net2)
        prob_arr.append(prob)
        for acc, t in zip(g2, gk):
            acc += t
        ind += sl + 1
    for _ in range(model.num_networks_3):
        prob, gk = _ref_step(prob_arr[-1], sel[ind:ind + sl], *model.net3)
        prob_arr.append(prob)
        for acc, t in zip(g3, gk):
            acc += t
        ind += sl
    return prob_arr, g2, g3


# ----------------------------- main ------------------------------------------
if __name__ == "__main__":
    key = jax.random.PRNGKey(0)
    k_params, k_sel = jax.random.split(key)

    library_len, num_library_fns, org_dim, selection_length = 6, 3, 6, 4
    model = PallasModel(library_len, num_library_fns, org_dim, selection_length, k_params)

    total_bits = org_dim * num_library_fns        # 18
    selection_arr = np.asarray(
        jax.random.bernoulli(k_sel, 0.5, (total_bits,)).astype(jnp.float32))
    x = {'probability_lib_selection': [0.7], 'selection_arr': selection_arr}

    result = model.forward(x)
    jax.block_until_ready(result['grads_network_2'])
    jax.block_until_ready(result['grads_network_3'])

    ref_probs, ref_g2, ref_g3 = reference_forward(model, x)
    np.testing.assert_allclose(np.array(result['sample_probability_array'], np.float64),
                               np.array(ref_probs, np.float64), rtol=2e-2, atol=2e-3)
    for got, want in zip(result['grads_network_2'], ref_g2):
        np.testing.assert_allclose(np.asarray(got, np.float64), want, rtol=2e-2, atol=2e-3)
    for got, want in zip(result['grads_network_3'], ref_g3):
        np.testing.assert_allclose(np.asarray(got, np.float64), want, rtol=2e-2, atol=2e-3)

    print("KERNEL_OK")
</pallas_src>

<mosaic_0001>
module attributes {stable_mosaic.version = 11 : i64} {
  func.func @kernel(%arg0: memref<4x2xi32, #tpu.memory_space<smem>>, %arg1: memref<1x1xf32, #tpu.memory_space<smem>>, %arg2: memref<8x128xf32, #tpu.memory_space<vmem>>, %arg3: memref<8x128xf32, #tpu.memory_space<vmem>>) attributes {dimension_semantics = [], scalar_prefetch = 0 : i64, scratch_operands = 0 : i64, tpu.core_type = #tpu.core_type<tc>} {
    %cst = arith.constant 0.000000e+00 : f32
    %0 = vector.broadcast %cst : f32 to vector<8x128xf32>
    %c0 = arith.constant 0 : index
    %c0_0 = arith.constant 0 : index
    %1 = vector.load %arg3[%c0, %c0_0] : memref<8x128xf32, #tpu.memory_space<vmem>>, vector<8x128xf32>
    tpu.vector_store %arg3[%c0, %c0_0], %0 {strides = array<i32>} : memref<8x128xf32, #tpu.memory_space<vmem>>, vector<8x128xf32>,
    %c0_1 = arith.constant 0 : index
    %c0_2 = arith.constant 0 : index
    %2 = memref.load %arg1[%c0_1, %c0_2] : memref<1x1xf32, #tpu.memory_space<smem>>
    %c0_3 = arith.constant 0 : index
    %c0_4 = arith.constant 0 : index
    %3 = vector.load %arg2[%c0_3, %c0_4] : memref<8x128xf32, #tpu.memory_space<vmem>>, vector<4x32xf32>
    %c0_5 = arith.constant 0 : index
    %c48 = arith.constant 48 : index
    %4 = vector.load %arg2[%c0_5, %c48] : memref<8x128xf32, #tpu.memory_space<vmem>>, vector<4x1xf32>
    %c0_6 = arith.constant 0 : index
    %c49 = arith.constant 49 : index
    %5 = vector.load %arg2[%c0_6, %c49] : memref<8x128xf32, #tpu.memory_space<vmem>>, vector<4x1xf32>
    %c4 = arith.constant 4 : index
    %c48_7 = arith.constant 48 : index
    %6 = vector.load %arg2[%c4, %c48_7] : memref<8x128xf32, #tpu.memory_space<vmem>>, vector<1x1xf32>
    %7 = tpu.iota {dimensions = array<i32: 1>} : vector<1x32xi32>
    %c0_i32 = arith.constant 0 : i32
    %8 = vector.broadcast %c0_i32 : i32 to vector<1x32xi32>
    %c0_i32_8 = arith.constant 0 : i32
    %9 = vector.broadcast %c0_i32_8 : i32 to vector<1x32xi32>
    %10 = arith.shrsi %7, %9 : vector<1x32xi32>
    %c1_i32 = arith.constant 1 : i32
    %11 = vector.broadcast %c1_i32 : i32 to vector<1x32xi32>
    %12 = arith.andi %10, %11 : vector<1x32xi32>
    %13 = arith.addi %8, %12 : vector<1x32xi32>
    %c1_i32_9 = arith.constant 1 : i32
    %14 = vector.broadcast %c1_i32_9 : i32 to vector<1x32xi32>
    %15 = arith.shrsi %7, %14 : vector<1x32xi32>
    %c1_i32_10 = arith.constant 1 : i32
    %16 = vector.broadcast %c1_i32_10 : i32 to vector<1x32xi32>
    %17 = arith.andi %15, %16 : vector<1x32xi32>
    %18 = arith.addi %13, %17 : vector<1x32xi32>
    %c2_i32 = arith.constant 2 : i32
    %19 = vector.broadcast %c2_i32 : i32 to vector<1x32xi32>
    %20 = arith.shrsi %7, %19 : vector<1x32xi32>
    %c1_i32_11 = arith.constant 1 : i32
    %21 = vector.broadcast %c1_i32_11 : i32 to vector<1x32xi32>
    %22 = arith.andi %20, %21 : vector<1x32xi32>
    %23 = arith.addi %18, %22 : vector<1x32xi32>
    %c3_i32 = arith.constant 3 : i32
    %24 = vector.broadcast %c3_i32 : i32 to vector<1x32xi32>
    %25 = arith.shrsi %7, %24 : vector<1x32xi32>
    %c1_i32_12 = arith.constant 1 : i32
    %26 = vector.broadcast %c1_i32_12 : i32 to vector<1x32xi32>
    %27 = arith.andi %25, %26 : vector<1x32xi32>
    %28 = arith.addi %23, %27 : vector<1x32xi32>
    %c4_i32 = arith.constant 4 : i32
    %29 = vector.broadcast %c4_i32 : i32 to vector<1x32xi32>
    %30 = arith.shrsi %7, %29 : vector<1x32xi32>
    %c1_i32_13 = arith.constant 1 : i32
    %31 = vector.broadcast %c1_i32_13 : i32 to vector<1x32xi32>
    %32 = arith.andi %30, %31 : vector<1x32xi32>
    %33 = arith.addi %28, %32 : vector<1x32xi32>
    %cst_14 = arith.constant 0.000000e+00 : f32
    %34 = vector.broadcast %cst_14 : f32 to vector<1x32xf32>
    %cst_15 = arith.constant 0.000000e+00 : f32
    %35 = vector.broadcast %cst_15 : f32 to vector<4x32xf32>
    %cst_16 = arith.constant 0.000000e+00 : f32
    %36 = vector.broadcast %cst_16 : f32 to vector<4x32xf32>
    %cst_17 = arith.constant 0.000000e+00 : f32
    %37 = vector.broadcast %cst_17 : f32 to vector<4x32xf32>
    %c0_18 = arith.constant 0 : index
    %c0_19 = arith.constant 0 : index
    %38 = memref.load %arg0[%c0_18, %c0_19] : memref<4x2xi32, #tpu.memory_space<smem>>
    %c0_20 = arith.constant 0 : index
    %c1 = arith.constant 1 : index
    %39 = memref.load %arg0[%c0_20, %c1] : memref<4x2xi32, #tpu.memory_space<smem>>
    %40 = vector.broadcast %39 : i32 to vector<1x32xi32>
    %41 = arith.cmpi eq, %33, %40 : vector<1x32xi32>
    %cst_21 = arith.constant 1.000000e+00 : f32
    %cst_22 = arith.constant 0.000000e+00 : f32
    %42 = vector.broadcast %cst_21 : f32 to vector<1x32xf32>
    %43 = vector.broadcast %cst_22 : f32 to vector<1x32xf32>
    %44 = arith.select %41, %42, %43 : vector<1x32xi1>, vector<1x32xf32>
    %45 = vector.broadcast %38 : i32 to vector<1x32xi32>
    %46 = arith.cmpi eq, %7, %45 : vector<1x32xi32>
    %cst_23 = arith.constant 1.000000e+00 : f32
    %cst_24 = arith.constant 0.000000e+00 : f32
    %47 = vector.broadcast %cst_23 : f32 to vector<1x32xf32>
    %48 = vector.broadcast %cst_24 : f32 to vector<1x32xf32>
    %49 = arith.select %46, %47, %48 : vector<1x32xi1>, vector<1x32xf32>
    %50 = vector.broadcast %2 : f32 to vector<4x1xf32>
    %51 = arith.mulf %4, %50 : vector<4x1xf32>
    %52 = vector.broadcast %51 : vector<4x1xf32> to vector<4x32xf32>
    %53 = arith.addf %3, %52 : vector<4x32xf32>
    %54 = math.tanh %53 : vector<4x32xf32>
    %55 = vector.broadcast %5 : vector<4x1xf32> to vector<4x32xf32>
    %56 = arith.mulf %55, %54 : vector<4x32xf32>
    %cst_25 = arith.constant dense<0.000000e+00> : vector<32xf32>
    %57 = vector.multi_reduction <add>, %56, %cst_25 [0] : vector<4x32xf32> to vector<32xf32>
    %58 = vector.shape_cast %57 : vector<32xf32> to vector<1x32xf32>
    %59 = vector.broadcast %6 : vector<1x1xf32> to vector<1x32xf32>
    %60 = arith.addf %59, %58 : vector<1x32xf32>
    %61 = math.exp %60 : vector<1x32xf32>
    %62 = arith.mulf %44, %61 : vector<1x32xf32>
    %cst_26 = arith.constant dense<0.000000e+00> : vector<1xf32>
    %63 = vector.multi_reduction <add>, %62, %cst_26 [1] : vector<1x32xf32> to vector<1xf32>
    %64 = vector.shape_cast %63 : vector<1xf32> to vector<1x1xf32>
    %65 = arith.mulf %49, %61 : vector<1x32xf32>
    %cst_27 = arith.constant dense<0.000000e+00> : vector<1xf32>
    %66 = vector.multi_reduction <add>, %65, %cst_27 [1] : vector<1x32xf32> to vector<1xf32>
    %67 = vector.shape_cast %66 : vector<1xf32> to vector<1x1xf32>
    %cst_28 = arith.constant 1.000000e+00 : f32
    %68 = vector.broadcast %cst_28 : f32 to vector<1x1xf32>
    %69 = arith.divf %68, %64 : vector<1x1xf32>
    %70 = arith.mulf %67, %69 : vector<1x1xf32>
    %71 = arith.mulf %44, %60 : vector<1x32xf32>
    %72 = vector.broadcast %69 : vector<1x1xf32> to vector<1x32xf32>
    %73 = arith.mulf %72, %71 : vector<1x32xf32>
    %74 = arith.subf %49, %73 : vector<1x32xf32>
    %75 = arith.mulf %54, %54 : vector<4x32xf32>
    %cst_29 = arith.constant 1.000000e+00 : f32
    %76 = vector.broadcast %cst_29 : f32 to vector<4x32xf32>
    %77 = arith.subf %76, %75 : vector<4x32xf32>
    %78 = vector.broadcast %5 : vector<4x1xf32> to vector<4x32xf32>
    %79 = arith.mulf %78, %77 : vector<4x32xf32>
    %80 = vector.broadcast %74 : vector<1x32xf32> to vector<4x32xf32>
    %81 = arith.mulf %80, %79 : vector<4x32xf32>
    %82 = arith.addf %34, %74 : vector<1x32xf32>
    %83 = vector.broadcast %74 : vector<1x32xf32> to vector<4x32xf32>
    %84 = arith.mulf %83, %54 : vector<4x32xf32>
    %85 = arith.addf %35, %84 : vector<4x32xf32>
    %86 = arith.addf %36, %81 : vector<4x32xf32>
    %87 = vector.broadcast %2 : f32 to vector<4x32xf32>
    %88 = arith.mulf %87, %81 : vector<4x32xf32>
    %89 = arith.addf %37, %88 : vector<4x32xf32>
    %c1_30 = arith.constant 1 : index
    %c0_31 = arith.constant 0 : index
    %90 = memref.load %arg0[%c1_30, %c0_31] : memref<4x2xi32, #tpu.memory_space<smem>>
    %c1_32 = arith.constant 1 : index
    %c1_33 = arith.constant 1 : index
    %91 = memref.load %arg0[%c1_32, %c1_33] : memref<4x2xi32, #tpu.memory_space<smem>>
    %92 = vector.broadcast %91 : i32 to vector<1x32xi32>
    %93 = arith.cmpi eq, %33, %92 : vector<1x32xi32>
    %cst_34 = arith.constant 1.000000e+00 : f32
    %cst_35 = arith.constant 0.000000e+00 : f32
    %94 = vector.broadcast %cst_34 : f32 to vector<1x32xf32>
    %95 = vector.broadcast %cst_35 : f32 to vector<1x32xf32>
    %96 = arith.select %93, %94, %95 : vector<1x32xi1>, vector<1x32xf32>
    %97 = vector.broadcast %90 : i32 to vector<1x32xi32>
    %98 = arith.cmpi eq, %7, %97 : vector<1x32xi32>
    %cst_36 = arith.constant 1.000000e+00 : f32
    %cst_37 = arith.constant 0.000000e+00 : f32
    %99 = vector.broadcast %cst_36 : f32 to vector<1x32xf32>
    %100 = vector.broadcast %cst_37 : f32 to vector<1x32xf32>
    %101 = arith.select %98, %99, %100 : vector<1x32xi1>, vector<1x32xf32>
    %102 = vector.broadcast %70 : vector<1x1xf32> to vector<4x1xf32>
    %103 = arith.mulf %4, %102 : vector<4x1xf32>
    %104 = vector.broadcast %103 : vector<4x1xf32> to vector<4x32xf32>
    %105 = arith.addf %3, %104 : vector<4x32xf32>
    %106 = math.tanh %105 : vector<4x32xf32>
    %107 = vector.broadcast %5 : vector<4x1xf32> to vector<4x32xf32>
    %108 = arith.mulf %107, %106 : vector<4x32xf32>
    %cst_38 = arith.constant dense<0.000000e+00> : vector<32xf32>
    %109 = vector.multi_reduction <add>, %108, %cst_38 [0] : vector<4x32xf32> to vector<32xf32>
    %110 = vector.shape_cast %109 : vector<32xf32> to vector<1x32xf32>
    %111 = vector.broadcast %6 : vector<1x1xf32> to vector<1x32xf32>
    %112 = arith.addf %111, %110 : vector<1x32xf32>
    %113 = math.exp %112 : vector<1x32xf32>
    %114 = arith.mulf %96, %113 : vector<1x32xf32>
    %cst_39 = arith.constant dense<0.000000e+00> : vector<1xf32>
    %115 = vector.multi_reduction <add>, %114, %cst_39 [1] : vector<1x32xf32> to vector<1xf32>
    %116 = vector.shape_cast %115 : vector<1xf32> to vector<1x1xf32>
    %117 = arith.mulf %101, %113 : vector<1x32xf32>
    %cst_40 = arith.constant dense<0.000000e+00> : vector<1xf32>
    %118 = vector.multi_reduction <add>, %117, %cst_40 [1] : vector<1x32xf32> to vector<1xf32>
    %119 = vector.shape_cast %118 : vector<1xf32> to vector<1x1xf32>
    %cst_41 = arith.constant 1.000000e+00 : f32
    %120 = vector.broadcast %cst_41 : f32 to vector<1x1xf32>
    %121 = arith.divf %120, %116 : vector<1x1xf32>
    %122 = arith.mulf %119, %121 : vector<1x1xf32>
    %123 = arith.mulf %96, %112 : vector<1x32xf32>
    %124 = vector.broadcast %121 : vector<1x1xf32> to vector<1x32xf32>
    %125 = arith.mulf %124, %123 : vector<1x32xf32>
    %126 = arith.subf %101, %125 : vector<1x32xf32>
    %127 = arith.mulf %106, %106 : vector<4x32xf32>
    %cst_42 = arith.constant 1.000000e+00 : f32
    %128 = vector.broadcast %cst_42 : f32 to vector<4x32xf32>
    %129 = arith.subf %128, %127 : vector<4x32xf32>
    %130 = vector.broadcast %5 : vector<4x1xf32> to vector<4x32xf32>
    %131 = arith.mulf %130, %129 : vector<4x32xf32>
    %132 = vector.broadcast %126 : vector<1x32xf32> to vector<4x32xf32>
    %133 = arith.mulf %132, %131 : vector<4x32xf32>
    %134 = arith.addf %82, %126 : vector<1x32xf32>
    %135 = vector.broadcast %126 : vector<1x32xf32> to vector<4x32xf32>
    %136 = arith.mulf %135, %106 : vector<4x32xf32>
    %137 = arith.addf %85, %136 : vector<4x32xf32>
    %138 = arith.addf %86, %133 : vector<4x32xf32>
    %139 = vector.broadcast %70 : vector<1x1xf32> to vector<4x32xf32>
    %140 = arith.mulf %139, %133 : vector<4x32xf32>
    %141 = arith.addf %89, %140 : vector<4x32xf32>
    %cst_43 = arith.constant dense<0.000000e+00> : vector<4xf32>
    %142 = vector.multi_reduction <add>, %141, %cst_43 [1] : vector<4x32xf32> to vector<4xf32>
    %143 = vector.shape_cast %142 : vector<4xf32> to vector<4x1xf32>
    %c0_44 = arith.constant 0 : index
    %c0_45 = arith.constant 0 : index
    %144 = vector.load %arg3[%c0_44, %c0_45] : memref<8x128xf32, #tpu.memory_space<vmem>>, vector<4x1xf32>
    tpu.vector_store %arg3[%c0_44, %c0_45], %143 {strides = array<i32>} : memref<8x128xf32, #tpu.memory_space<vmem>>, vector<4x1xf32>,
    %c4_i32_46 = arith.constant 4 : i32
    %145 = vector.broadcast %c4_i32_46 : i32 to vector<1x32xi32>
    %146 = arith.shrsi %7, %145 : vector<1x32xi32>
    %c1_i32_47 = arith.constant 1 : i32
    %147 = vector.broadcast %c1_i32_47 : i32 to vector<1x32xi32>
    %148 = arith.andi %146, %147 : vector<1x32xi32>
    %c0_i32_48 = arith.constant 0 : i32
    %149 = vector.broadcast %c0_i32_48 : i32 to vector<1x32xi32>
    %150 = arith.cmpi sgt, %148, %149 : vector<1x32xi32>
    %cst_49 = arith.constant 1.000000e+00 : f32
    %cst_50 = arith.constant 0.000000e+00 : f32
    %151 = vector.broadcast %cst_49 : f32 to vector<1x32xf32>
    %152 = vector.broadcast %cst_50 : f32 to vector<1x32xf32>
    %153 = arith.select %150, %151, %152 : vector<1x32xi1>, vector<1x32xf32>
    %154 = vector.broadcast %153 : vector<1x32xf32> to vector<4x32xf32>
    %155 = arith.mulf %138, %154 : vector<4x32xf32>
    %cst_51 = arith.constant dense<0.000000e+00> : vector<4xf32>
    %156 = vector.multi_reduction <add>, %155, %cst_51 [1] : vector<4x32xf32> to vector<4xf32>
    %157 = vector.shape_cast %156 : vector<4xf32> to vector<4x1xf32>
    %c0_52 = arith.constant 0 : index
    %c1_53 = arith.constant 1 : index
    %158 = vector.load %arg3[%c0_52, %c1_53] : memref<8x128xf32, #tpu.memory_space<vmem>>, vector<4x1xf32>
    tpu.vector_store %arg3[%c0_52, %c1_53], %157 {strides = array<i32>} : memref<8x128xf32, #tpu.memory_space<vmem>>, vector<4x1xf32>,
    %c3_i32_54 = arith.constant 3 : i32
    %159 = vector.broadcast %c3_i32_54 : i32 to vector<1x32xi32>
    %160 = arith.shrsi %7, %159 : vector<1x32xi32>
    %c1_i32_55 = arith.constant 1 : i32
    %161 = vector.broadcast %c1_i32_55 : i32 to vector<1x32xi32>
    %162 = arith.andi %160, %161 : vector<1x32xi32>
    %c0_i32_56 = arith.constant 0 : i32
    %163 = vector.broadcast %c0_i32_56 : i32 to vector<1x32xi32>
    %164 = arith.cmpi sgt, %162, %163 : vector<1x32xi32>
    %cst_57 = arith.constant 1.000000e+00 : f32
    %cst_58 = arith.constant 0.000000e+00 : f32
    %165 = vector.broadcast %cst_57 : f32 to vector<1x32xf32>
    %166 = vector.broadcast %cst_58 : f32 to vector<1x32xf32>
    %167 = arith.select %164, %165, %166 : vector<1x32xi1>, vector<1x32xf32>
    %168 = vector.broadcast %167 : vector<1x32xf32> to vector<4x32xf32>
    %169 = arith.mulf %138, %168 : vector<4x32xf32>
    %cst_59 = arith.constant dense<0.000000e+00> : vector<4xf32>
    %170 = vector.multi_reduction <add>, %169, %cst_59 [1] : vector<4x32xf32> to vector<4xf32>
    %171 = vector.shape_cast %170 : vector<4xf32> to vector<4x1xf32>
    %c0_60 = arith.constant 0 : index
    %c2 = arith.constant 2 : index
    %172 = vector.load %arg3[%c0_60, %c2] : memref<8x128xf32, #tpu.memory_space<vmem>>, vector<4x1xf32>
    tpu.vector_store %arg3[%c0_60, %c2], %171 {strides = array<i32>} : memref<8x128xf32, #tpu.memory_space<vmem>>, vector<4x1xf32>,
    %c2_i32_61 = arith.constant 2 : i32
    %173 = vector.broadcast %c2_i32_61 : i32 to vector<1x32xi32>
    %174 = arith.shrsi %7, %173 : vector<1x32xi32>
    %c1_i32_62 = arith.constant 1 : i32
    %175 = vector.broadcast %c1_i32_62 : i32 to vector<1x32xi32>
    %176 = arith.andi %174, %175 : vector<1x32xi32>
    %c0_i32_63 = arith.constant 0 : i32
    %177 = vector.broadcast %c0_i32_63 : i32 to vector<1x32xi32>
    %178 = arith.cmpi sgt, %176, %177 : vector<1x32xi32>
    %cst_64 = arith.constant 1.000000e+00 : f32
    %cst_65 = arith.constant 0.000000e+00 : f32
    %179 = vector.broadcast %cst_64 : f32 to vector<1x32xf32>
    %180 = vector.broadcast %cst_65 : f32 to vector<1x32xf32>
    %181 = arith.select %178, %179, %180 : vector<1x32xi1>, vector<1x32xf32>
    %182 = vector.broadcast %181 : vector<1x32xf32> to vector<4x32xf32>
    %183 = arith.mulf %138, %182 : vector<4x32xf32>
    %cst_66 = arith.constant dense<0.000000e+00> : vector<4xf32>
    %184 = vector.multi_reduction <add>, %183, %cst_66 [1] : vector<4x32xf32> to vector<4xf32>
    %185 = vector.shape_cast %184 : vector<4xf32> to vector<4x1xf32>
    %c0_67 = arith.constant 0 : index
    %c3 = arith.constant 3 : index
    %186 = vector.load %arg3[%c0_67, %c3] : memref<8x128xf32, #tpu.memory_space<vmem>>, vector<4x1xf32>
    tpu.vector_store %arg3[%c0_67, %c3], %185 {strides = array<i32>} : memref<8x128xf32, #tpu.memory_space<vmem>>, vector<4x1xf32>,
    %c1_i32_68 = arith.constant 1 : i32
    %187 = vector.broadcast %c1_i32_68 : i32 to vector<1x32xi32>
    %188 = arith.shrsi %7, %187 : vector<1x32xi32>
    %c1_i32_69 = arith.constant 1 : i32
    %189 = vector.broadcast %c1_i32_69 : i32 to vector<1x32xi32>
    %190 = arith.andi %188, %189 : vector<1x32xi32>
    %c0_i32_70 = arith.constant 0 : i32
    %191 = vector.broadcast %c0_i32_70 : i32 to vector<1x32xi32>
    %192 = arith.cmpi sgt, %190, %191 : vector<1x32xi32>
    %cst_71 = arith.constant 1.000000e+00 : f32
    %cst_72 = arith.constant 0.000000e+00 : f32
    %193 = vector.broadcast %cst_71 : f32 to vector<1x32xf32>
    %194 = vector.broadcast %cst_72 : f32 to vector<1x32xf32>
    %195 = arith.select %192, %193, %194 : vector<1x32xi1>, vector<1x32xf32>
    %196 = vector.broadcast %195 : vector<1x32xf32> to vector<4x32xf32>
    %197 = arith.mulf %138, %196 : vector<4x32xf32>
    %cst_73 = arith.constant dense<0.000000e+00> : vector<4xf32>
    %198 = vector.multi_reduction <add>, %197, %cst_73 [1] : vector<4x32xf32> to vector<4xf32>
    %199 = vector.shape_cast %198 : vector<4xf32> to vector<4x1xf32>
    %c0_74 = arith.constant 0 : index
    %c4_75 = arith.constant 4 : index
    %200 = vector.load %arg3[%c0_74, %c4_75] : memref<8x128xf32, #tpu.memory_space<vmem>>, vector<4x1xf32>
    tpu.vector_store %arg3[%c0_74, %c4_75], %199 {strides = array<i32>} : memref<8x128xf32, #tpu.memory_space<vmem>>, vector<4x1xf32>,
    %c0_i32_76 = arith.constant 0 : i32
    %201 = vector.broadcast %c0_i32_76 : i32 to vector<1x32xi32>
    %202 = arith.shrsi %7, %201 : vector<1x32xi32>
    %c1_i32_77 = arith.constant 1 : i32
    %203 = vector.broadcast %c1_i32_77 : i32 to vector<1x32xi32>
    %204 = arith.andi %202, %203 : vector<1x32xi32>
    %c0_i32_78 = arith.constant 0 : i32
    %205 = vector.broadcast %c0_i32_78 : i32 to vector<1x32xi32>
    %206 = arith.cmpi sgt, %204, %205 : vector<1x32xi32>
    %cst_79 = arith.constant 1.000000e+00 : f32
    %cst_80 = arith.constant 0.000000e+00 : f32
    %207 = vector.broadcast %cst_79 : f32 to vector<1x32xf32>
    %208 = vector.broadcast %cst_80 : f32 to vector<1x32xf32>
    %209 = arith.select %206, %207, %208 : vector<1x32xi1>, vector<1x32xf32>
    %210 = vector.broadcast %209 : vector<1x32xf32> to vector<4x32xf32>
    %211 = arith.mulf %138, %210 : vector<4x32xf32>
    %cst_81 = arith.constant dense<0.000000e+00> : vector<4xf32>
    %212 = vector.multi_reduction <add>, %211, %cst_81 [1] : vector<4x32xf32> to vector<4xf32>
    %213 = vector.shape_cast %212 : vector<4xf32> to vector<4x1xf32>
    %c0_82 = arith.constant 0 : index
    %c5 = arith.constant 5 : index
    %214 = vector.load %arg3[%c0_82, %c5] : memref<8x128xf32, #tpu.memory_space<vmem>>, vector<4x1xf32>
    tpu.vector_store %arg3[%c0_82, %c5], %213 {strides = array<i32>} : memref<8x128xf32, #tpu.memory_space<vmem>>, vector<4x1xf32>,
    %cst_83 = arith.constant dense<0.000000e+00> : vector<4xf32>
    %215 = vector.multi_reduction <add>, %138, %cst_83 [1] : vector<4x32xf32> to vector<4xf32>
    %216 = vector.shape_cast %215 : vector<4xf32> to vector<4x1xf32>
    %c0_84 = arith.constant 0 : index
    %c6 = arith.constant 6 : index
    %217 = vector.load %arg3[%c0_84, %c6] : memref<8x128xf32, #tpu.memory_space<vmem>>, vector<4x1xf32>
    tpu.vector_store %arg3[%c0_84, %c6], %216 {strides = array<i32>} : memref<8x128xf32, #tpu.memory_space<vmem>>, vector<4x1xf32>,
    %cst_85 = arith.constant dense<0.000000e+00> : vector<4xf32>
    %218 = vector.multi_reduction <add>, %137, %cst_85 [1] : vector<4x32xf32> to vector<4xf32>
    %219 = vector.shape_cast %218 : vector<4xf32> to vector<4x1xf32>
    %c0_86 = arith.constant 0 : index
    %c7 = arith.constant 7 : index
    %220 = vector.load %arg3[%c0_86, %c7] : memref<8x128xf32, #tpu.memory_space<vmem>>, vector<4x1xf32>
    tpu.vector_store %arg3[%c0_86, %c7], %219 {strides = array<i32>} : memref<8x128xf32, #tpu.memory_space<vmem>>, vector<4x1xf32>,
    %cst_87 = arith.constant dense<0.000000e+00> : vector<1xf32>
    %221 = vector.multi_reduction <add>, %134, %cst_87 [1] : vector<1x32xf32> to vector<1xf32>
    %222 = vector.shape_cast %221 : vector<1xf32> to vector<1x1xf32>
    %c4_88 = arith.constant 4 : index
    %c0_89 = arith.constant 0 : index
    %223 = vector.load %arg3[%c4_88, %c0_89] : memref<8x128xf32, #tpu.memory_space<vmem>>, vector<1x1xf32>
    tpu.vector_store %arg3[%c4_88, %c0_89], %222 {strides = array<i32>} : memref<8x128xf32, #tpu.memory_space<vmem>>, vector<1x1xf32>,
    %c0_90 = arith.constant 0 : index
    %c32 = arith.constant 32 : index
    %224 = vector.load %arg2[%c0_90, %c32] : memref<8x128xf32, #tpu.memory_space<vmem>>, vector<4x16xf32>
    %c0_91 = arith.constant 0 : index
    %c50 = arith.constant 50 : index
    %225 = vector.load %arg2[%c0_91, %c50] : memref<8x128xf32, #tpu.memory_space<vmem>>, vector<4x1xf32>
    %c0_92 = arith.constant 0 : index
    %c51 = arith.constant 51 : index
    %226 = vector.load %arg2[%c0_92, %c51] : memref<8x128xf32, #tpu.memory_space<vmem>>, vector<4x1xf32>
    %c4_93 = arith.constant 4 : index
    %c50_94 = arith.constant 50 : index
    %227 = vector.load %arg2[%c4_93, %c50_94] : memref<8x128xf32, #tpu.memory_space<vmem>>, vector<1x1xf32>
    %228 = tpu.iota {dimensions = array<i32: 1>} : vector<1x16xi32>
    %c0_i32_95 = arith.constant 0 : i32
    %229 = vector.broadcast %c0_i32_95 : i32 to vector<1x16xi32>
    %c0_i32_96 = arith.constant 0 : i32
    %230 = vector.broadcast %c0_i32_96 : i32 to vector<1x16xi32>
    %231 = arith.shrsi %228, %230 : vector<1x16xi32>
    %c1_i32_97 = arith.constant 1 : i32
    %232 = vector.broadcast %c1_i32_97 : i32 to vector<1x16xi32>
    %233 = arith.andi %231, %232 : vector<1x16xi32>
    %234 = arith.addi %229, %233 : vector<1x16xi32>
    %c1_i32_98 = arith.constant 1 : i32
    %235 = vector.broadcast %c1_i32_98 : i32 to vector<1x16xi32>
    %236 = arith.shrsi %228, %235 : vector<1x16xi32>
    %c1_i32_99 = arith.constant 1 : i32
    %237 = vector.broadcast %c1_i32_99 : i32 to vector<1x16xi32>
    %238 = arith.andi %236, %237 : vector<1x16xi32>
    %239 = arith.addi %234, %238 : vector<1x16xi32>
    %c2_i32_100 = arith.constant 2 : i32
    %240 = vector.broadcast %c2_i32_100 : i32 to vector<1x16xi32>
    %241 = arith.shrsi %228, %240 : vector<1x16xi32>
    %c1_i32_101 = arith.constant 1 : i32
    %242 = vector.broadcast %c1_i32_101 : i32 to vector<1x16xi32>
    %243 = arith.andi %241, %242 : vector<1x16xi32>
    %244 = arith.addi %239, %243 : vector<1x16xi32>
    %c3_i32_102 = arith.constant 3 : i32
    %245 = vector.broadcast %c3_i32_102 : i32 to vector<1x16xi32>
    %246 = arith.shrsi %228, %245 : vector<1x16xi32>
    %c1_i32_103 = arith.constant 1 : i32
    %247 = vector.broadcast %c1_i32_103 : i32 to vector<1x16xi32>
    %248 = arith.andi %246, %247 : vector<1x16xi32>
    %249 = arith.addi %244, %248 : vector<1x16xi32>
    %cst_104 = arith.constant 0.000000e+00 : f32
    %250 = vector.broadcast %cst_104 : f32 to vector<1x16xf32>
    %cst_105 = arith.constant 0.000000e+00 : f32
    %251 = vector.broadcast %cst_105 : f32 to vector<4x16xf32>
    %cst_106 = arith.constant 0.000000e+00 : f32
    %252 = vector.broadcast %cst_106 : f32 to vector<4x16xf32>
    %cst_107 = arith.constant 0.000000e+00 : f32
    %253 = vector.broadcast %cst_107 : f32 to vector<4x16xf32>
    %c2_108 = arith.constant 2 : index
    %c0_109 = arith.constant 0 : index
    %254 = memref.load %arg0[%c2_108, %c0_109] : memref<4x2xi32, #tpu.memory_space<smem>>
    %c2_110 = arith.constant 2 : index
    %c1_111 = arith.constant 1 : index
    %255 = memref.load %arg0[%c2_110, %c1_111] : memref<4x2xi32, #tpu.memory_space<smem>>
    %256 = vector.broadcast %255 : i32 to vector<1x16xi32>
    %257 = arith.cmpi eq, %249, %256 : vector<1x16xi32>
    %cst_112 = arith.constant 1.000000e+00 : f32
    %cst_113 = arith.constant 0.000000e+00 : f32
    %258 = vector.broadcast %cst_112 : f32 to vector<1x16xf32>
    %259 = vector.broadcast %cst_113 : f32 to vector<1x16xf32>
    %260 = arith.select %257, %258, %259 : vector<1x16xi1>, vector<1x16xf32>
    %261 = vector.broadcast %254 : i32 to vector<1x16xi32>
    %262 = arith.cmpi eq, %228, %261 : vector<1x16xi32>
    %cst_114 = arith.constant 1.000000e+00 : f32
    %cst_115 = arith.constant 0.000000e+00 : f32
    %263 = vector.broadcast %cst_114 : f32 to vector<1x16xf32>
    %264 = vector.broadcast %cst_115 : f32 to vector<1x16xf32>
    %265 = arith.select %262, %263, %264 : vector<1x16xi1>, vector<1x16xf32>
    %266 = vector.broadcast %122 : vector<1x1xf32> to vector<4x1xf32>
    %267 = arith.mulf %225, %266 : vector<4x1xf32>
    %268 = vector.broadcast %267 : vector<4x1xf32> to vector<4x16xf32>
    %269 = arith.addf %224, %268 : vector<4x16xf32>
    %270 = math.tanh %269 : vector<4x16xf32>
    %271 = vector.broadcast %226 : vector<4x1xf32> to vector<4x16xf32>
    %272 = arith.mulf %271, %270 : vector<4x16xf32>
    %cst_116 = arith.constant dense<0.000000e+00> : vector<16xf32>
    %273 = vector.multi_reduction <add>, %272, %cst_116 [0] : vector<4x16xf32> to vector<16xf32>
    %274 = vector.shape_cast %273 : vector<16xf32> to vector<1x16xf32>
    %275 = vector.broadcast %227 : vector<1x1xf32> to vector<1x16xf32>
    %276 = arith.addf %275, %274 : vector<1x16xf32>
    %277 = math.exp %276 : vector<1x16xf32>
    %278 = arith.mulf %260, %277 : vector<1x16xf32>
    %cst_117 = arith.constant dense<0.000000e+00> : vector<1xf32>
    %279 = vector.multi_reduction <add>, %278, %cst_117 [1] : vector<1x16xf32> to vector<1xf32>
    %280 = vector.shape_cast %279 : vector<1xf32> to vector<1x1xf32>
    %281 = arith.mulf %265, %277 : vector<1x16xf32>
    %cst_118 = arith.constant dense<0.000000e+00> : vector<1xf32>
    %282 = vector.multi_reduction <add>, %281, %cst_118 [1] : vector<1x16xf32> to vector<1xf32>
    %283 = vector.shape_cast %282 : vector<1xf32> to vector<1x1xf32>
    %cst_119 = arith.constant 1.000000e+00 : f32
    %284 = vector.broadcast %cst_119 : f32 to vector<1x1xf32>
    %285 = arith.divf %284, %280 : vector<1x1xf32>
    %286 = arith.mulf %283, %285 : vector<1x1xf32>
    %287 = arith.mulf %260, %276 : vector<1x16xf32>
    %288 = vector.broadcast %285 : vector<1x1xf32> to vector<1x16xf32>
    %289 = arith.mulf %288, %287 : vector<1x16xf32>
    %290 = arith.subf %265, %289 : vector<1x16xf32>
    %291 = arith.mulf %270, %270 : vector<4x16xf32>
    %cst_120 = arith.constant 1.000000e+00 : f32
    %292 = vector.broadcast %cst_120 : f32 to vector<4x16xf32>
    %293 = arith.subf %292, %291 : vector<4x16xf32>
    %294 = vector.broadcast %226 : vector<4x1xf32> to vector<4x16xf32>
    %295 = arith.mulf %294, %293 : vector<4x16xf32>
    %296 = vector.broadcast %290 : vector<1x16xf32> to vector<4x16xf32>
    %297 = arith.mulf %296, %295 : vector<4x16xf32>
    %298 = arith.addf %250, %290 : vector<1x16xf32>
    %299 = vector.broadcast %290 : vector<1x16xf32> to vector<4x16xf32>
    %300 = arith.mulf %299, %270 : vector<4x16xf32>
    %301 = arith.addf %251, %300 : vector<4x16xf32>
    %302 = arith.addf %252, %297 : vector<4x16xf32>
    %303 = vector.broadcast %122 : vector<1x1xf32> to vector<4x16xf32>
    %304 = arith.mulf %303, %297 : vector<4x16xf32>
    %305 = arith.addf %253, %304 : vector<4x16xf32>
    %c3_121 = arith.constant 3 : index
    %c0_122 = arith.constant 0 : index
    %306 = memref.load %arg0[%c3_121, %c0_122] : memref<4x2xi32, #tpu.memory_space<smem>>
    %c3_123 = arith.constant 3 : index
    %c1_124 = arith.constant 1 : index
    %307 = memref.load %arg0[%c3_123, %c1_124] : memref<4x2xi32, #tpu.memory_space<smem>>
    %308 = vector.broadcast %307 : i32 to vector<1x16xi32>
    %309 = arith.cmpi eq, %249, %308 : vector<1x16xi32>
    %cst_125 = arith.constant 1.000000e+00 : f32
    %cst_126 = arith.constant 0.000000e+00 : f32
    %310 = vector.broadcast %cst_125 : f32 to vector<1x16xf32>
    %311 = vector.broadcast %cst_126 : f32 to vector<1x16xf32>
    %312 = arith.select %309, %310, %311 : vector<1x16xi1>, vector<1x16xf32>
    %313 = vector.broadcast %306 : i32 to vector<1x16xi32>
    %314 = arith.cmpi eq, %228, %313 : vector<1x16xi32>
    %cst_127 = arith.constant 1.000000e+00 : f32
    %cst_128 = arith.constant 0.000000e+00 : f32
    %315 = vector.broadcast %cst_127 : f32 to vector<1x16xf32>
    %316 = vector.broadcast %cst_128 : f32 to vector<1x16xf32>
    %317 = arith.select %314, %315, %316 : vector<1x16xi1>, vector<1x16xf32>
    %318 = vector.broadcast %286 : vector<1x1xf32> to vector<4x1xf32>
    %319 = arith.mulf %225, %318 : vector<4x1xf32>
    %320 = vector.broadcast %319 : vector<4x1xf32> to vector<4x16xf32>
    %321 = arith.addf %224, %320 : vector<4x16xf32>
    %322 = math.tanh %321 : vector<4x16xf32>
    %323 = vector.broadcast %226 : vector<4x1xf32> to vector<4x16xf32>
    %324 = arith.mulf %323, %322 : vector<4x16xf32>
    %cst_129 = arith.constant dense<0.000000e+00> : vector<16xf32>
    %325 = vector.multi_reduction <add>, %324, %cst_129 [0] : vector<4x16xf32> to vector<16xf32>
    %326 = vector.shape_cast %325 : vector<16xf32> to vector<1x16xf32>
    %327 = vector.broadcast %227 : vector<1x1xf32> to vector<1x16xf32>
    %328 = arith.addf %327, %326 : vector<1x16xf32>
    %329 = math.exp %328 : vector<1x16xf32>
    %330 = arith.mulf %312, %329 : vector<1x16xf32>
    %cst_130 = arith.constant dense<0.000000e+00> : vector<1xf32>
    %331 = vector.multi_reduction <add>, %330, %cst_130 [1] : vector<1x16xf32> to vector<1xf32>
    %332 = vector.shape_cast %331 : vector<1xf32> to vector<1x1xf32>
    %333 = arith.mulf %317, %329 : vector<1x16xf32>
    %cst_131 = arith.constant dense<0.000000e+00> : vector<1xf32>
    %334 = vector.multi_reduction <add>, %333, %cst_131 [1] : vector<1x16xf32> to vector<1xf32>
    %335 = vector.shape_cast %334 : vector<1xf32> to vector<1x1xf32>
    %cst_132 = arith.constant 1.000000e+00 : f32
    %336 = vector.broadcast %cst_132 : f32 to vector<1x1xf32>
    %337 = arith.divf %336, %332 : vector<1x1xf32>
    %338 = arith.mulf %335, %337 : vector<1x1xf32>
    %339 = arith.mulf %312, %328 : vector<1x16xf32>
    %340 = vector.broadcast %337 : vector<1x1xf32> to vector<1x16xf32>
    %341 = arith.mulf %340, %339 : vector<1x16xf32>
    %342 = arith.subf %317, %341 : vector<1x16xf32>
    %343 = arith.mulf %322, %322 : vector<4x16xf32>
    %cst_133 = arith.constant 1.000000e+00 : f32
    %344 = vector.broadcast %cst_133 : f32 to vector<4x16xf32>
    %345 = arith.subf %344, %343 : vector<4x16xf32>
    %346 = vector.broadcast %226 : vector<4x1xf32> to vector<4x16xf32>
    %347 = arith.mulf %346, %345 : vector<4x16xf32>
    %348 = vector.broadcast %342 : vector<1x16xf32> to vector<4x16xf32>
    %349 = arith.mulf %348, %347 : vector<4x16xf32>
    %350 = arith.addf %298, %342 : vector<1x16xf32>
    %351 = vector.broadcast %342 : vector<1x16xf32> to vector<4x16xf32>
    %352 = arith.mulf %351, %322 : vector<4x16xf32>
    %353 = arith.addf %301, %352 : vector<4x16xf32>
    %354 = arith.addf %302, %349 : vector<4x16xf32>
    %355 = vector.broadcast %286 : vector<1x1xf32> to vector<4x16xf32>
    %356 = arith.mulf %355, %349 : vector<4x16xf32>
    %357 = arith.addf %305, %356 : vector<4x16xf32>
    %cst_134 = arith.constant dense<0.000000e+00> : vector<4xf32>
    %358 = vector.multi_reduction <add>, %357, %cst_134 [1] : vector<4x16xf32> to vector<4xf32>
    %359 = vector.shape_cast %358 : vector<4xf32> to vector<4x1xf32>
    %c0_135 = arith.constant 0 : index
    %c8 = arith.constant 8 : index
    %360 = vector.load %arg3[%c0_135, %c8] : memref<8x128xf32, #tpu.memory_space<vmem>>, vector<4x1xf32>
    tpu.vector_store %arg3[%c0_135, %c8], %359 {strides = array<i32>} : memref<8x128xf32, #tpu.memory_space<vmem>>, vector<4x1xf32>,
    %c3_i32_136 = arith.constant 3 : i32
    %361 = vector.broadcast %c3_i32_136 : i32 to vector<1x16xi32>
    %362 = arith.shrsi %228, %361 : vector<1x16xi32>
    %c1_i32_137 = arith.constant 1 : i32
    %363 = vector.broadcast %c1_i32_137 : i32 to vector<1x16xi32>
    %364 = arith.andi %362, %363 : vector<1x16xi32>
    %c0_i32_138 = arith.constant 0 : i32
    %365 = vector.broadcast %c0_i32_138 : i32 to vector<1x16xi32>
    %366 = arith.cmpi sgt, %364, %365 : vector<1x16xi32>
    %cst_139 = arith.constant 1.000000e+00 : f32
    %cst_140 = arith.constant 0.000000e+00 : f32
    %367 = vector.broadcast %cst_139 : f32 to vector<1x16xf32>
    %368 = vector.broadcast %cst_140 : f32 to vector<1x16xf32>
    %369 = arith.select %366, %367, %368 : vector<1x16xi1>, vector<1x16xf32>
    %370 = vector.broadcast %369 : vector<1x16xf32> to vector<4x16xf32>
    %371 = arith.mulf %354, %370 : vector<4x16xf32>
    %cst_141 = arith.constant dense<0.000000e+00> : vector<4xf32>
    %372 = vector.multi_reduction <add>, %371, %cst_141 [1] : vector<4x16xf32> to vector<4xf32>
    %373 = vector.shape_cast %372 : vector<4xf32> to vector<4x1xf32>
    %c0_142 = arith.constant 0 : index
    %c9 = arith.constant 9 : index
    %374 = vector.load %arg3[%c0_142, %c9] : memref<8x128xf32, #tpu.memory_space<vmem>>, vector<4x1xf32>
    tpu.vector_store %arg3[%c0_142, %c9], %373 {strides = array<i32>} : memref<8x128xf32, #tpu.memory_space<vmem>>, vector<4x1xf32>,
    %c2_i32_143 = arith.constant 2 : i32
    %375 = vector.broadcast %c2_i32_143 : i32 to vector<1x16xi32>
    %376 = arith.shrsi %228, %375 : vector<1x16xi32>
    %c1_i32_144 = arith.constant 1 : i32
    %377 = vector.broadcast %c1_i32_144 : i32 to vector<1x16xi32>
    %378 = arith.andi %376, %377 : vector<1x16xi32>
    %c0_i32_145 = arith.constant 0 : i32
    %379 = vector.broadcast %c0_i32_145 : i32 to vector<1x16xi32>
    %380 = arith.cmpi sgt, %378, %379 : vector<1x16xi32>
    %cst_146 = arith.constant 1.000000e+00 : f32
    %cst_147 = arith.constant 0.000000e+00 : f32
    %381 = vector.broadcast %cst_146 : f32 to vector<1x16xf32>
    %382 = vector.broadcast %cst_147 : f32 to vector<1x16xf32>
    %383 = arith.select %380, %381, %382 : vector<1x16xi1>, vector<1x16xf32>
    %384 = vector.broadcast %383 : vector<1x16xf32> to vector<4x16xf32>
    %385 = arith.mulf %354, %384 : vector<4x16xf32>
    %cst_148 = arith.constant dense<0.000000e+00> : vector<4xf32>
    %386 = vector.multi_reduction <add>, %385, %cst_148 [1] : vector<4x16xf32> to vector<4xf32>
    %387 = vector.shape_cast %386 : vector<4xf32> to vector<4x1xf32>
    %c0_149 = arith.constant 0 : index
    %c10 = arith.constant 10 : index
    %388 = vector.load %arg3[%c0_149, %c10] : memref<8x128xf32, #tpu.memory_space<vmem>>, vector<4x1xf32>
    tpu.vector_store %arg3[%c0_149, %c10], %387 {strides = array<i32>} : memref<8x128xf32, #tpu.memory_space<vmem>>, vector<4x1xf32>,
    %c1_i32_150 = arith.constant 1 : i32
    %389 = vector.broadcast %c1_i32_150 : i32 to vector<1x16xi32>
    %390 = arith.shrsi %228, %389 : vector<1x16xi32>
    %c1_i32_151 = arith.constant 1 : i32
    %391 = vector.broadcast %c1_i32_151 : i32 to vector<1x16xi32>
    %392 = arith.andi %390, %391 : vector<1x16xi32>
    %c0_i32_152 = arith.constant 0 : i32
    %393 = vector.broadcast %c0_i32_152 : i32 to vector<1x16xi32>
    %394 = arith.cmpi sgt, %392, %393 : vector<1x16xi32>
    %cst_153 = arith.constant 1.000000e+00 : f32
    %cst_154 = arith.constant 0.000000e+00 : f32
    %395 = vector.broadcast %cst_153 : f32 to vector<1x16xf32>
    %396 = vector.broadcast %cst_154 : f32 to vector<1x16xf32>
    %397 = arith.select %394, %395, %396 : vector<1x16xi1>, vector<1x16xf32>
    %398 = vector.broadcast %397 : vector<1x16xf32> to vector<4x16xf32>
    %399 = arith.mulf %354, %398 : vector<4x16xf32>
    %cst_155 = arith.constant dense<0.000000e+00> : vector<4xf32>
    %400 = vector.multi_reduction <add>, %399, %cst_155 [1] : vector<4x16xf32> to vector<4xf32>
    %401 = vector.shape_cast %400 : vector<4xf32> to vector<4x1xf32>
    %c0_156 = arith.constant 0 : index
    %c11 = arith.constant 11 : index
    %402 = vector.load %arg3[%c0_156, %c11] : memref<8x128xf32, #tpu.memory_space<vmem>>, vector<4x1xf32>
    tpu.vector_store %arg3[%c0_156, %c11], %401 {strides = array<i32>} : memref<8x128xf32, #tpu.memory_space<vmem>>, vector<4x1xf32>,
    %c0_i32_157 = arith.constant 0 : i32
    %403 = vector.broadcast %c0_i32_157 : i32 to vector<1x16xi32>
    %404 = arith.shrsi %228, %403 : vector<1x16xi32>
    %c1_i32_158 = arith.constant 1 : i32
    %405 = vector.broadcast %c1_i32_158 : i32 to vector<1x16xi32>
    %406 = arith.andi %404, %405 : vector<1x16xi32>
    %c0_i32_159 = arith.constant 0 : i32
    %407 = vector.broadcast %c0_i32_159 : i32 to vector<1x16xi32>
    %408 = arith.cmpi sgt, %406, %407 : vector<1x16xi32>
    %cst_160 = arith.constant 1.000000e+00 : f32
    %cst_161 = arith.constant 0.000000e+00 : f32
    %409 = vector.broadcast %cst_160 : f32 to vector<1x16xf32>
    %410 = vector.broadcast %cst_161 : f32 to vector<1x16xf32>
    %411 = arith.select %408, %409, %410 : vector<1x16xi1>, vector<1x16xf32>
    %412 = vector.broadcast %411 : vector<1x16xf32> to vector<4x16xf32>
    %413 = arith.mulf %354, %412 : vector<4x16xf32>
    %cst_162 = arith.constant dense<0.000000e+00> : vector<4xf32>
    %414 = vector.multi_reduction <add>, %413, %cst_162 [1] : vector<4x16xf32> to vector<4xf32>
    %415 = vector.shape_cast %414 : vector<4xf32> to vector<4x1xf32>
    %c0_163 = arith.constant 0 : index
    %c12 = arith.constant 12 : index
    %416 = vector.load %arg3[%c0_163, %c12] : memref<8x128xf32, #tpu.memory_space<vmem>>, vector<4x1xf32>
    tpu.vector_store %arg3[%c0_163, %c12], %415 {strides = array<i32>} : memref<8x128xf32, #tpu.memory_space<vmem>>, vector<4x1xf32>,
    %cst_164 = arith.constant dense<0.000000e+00> : vector<4xf32>
    %417 = vector.multi_reduction <add>, %354, %cst_164 [1] : vector<4x16xf32> to vector<4xf32>
    %418 = vector.shape_cast %417 : vector<4xf32> to vector<4x1xf32>
    %c0_165 = arith.constant 0 : index
    %c13 = arith.constant 13 : index
    %419 = vector.load %arg3[%c0_165, %c13] : memref<8x128xf32, #tpu.memory_space<vmem>>, vector<4x1xf32>
    tpu.vector_store %arg3[%c0_165, %c13], %418 {strides = array<i32>} : memref<8x128xf32, #tpu.memory_space<vmem>>, vector<4x1xf32>,
    %cst_166 = arith.constant dense<0.000000e+00> : vector<4xf32>
    %420 = vector.multi_reduction <add>, %353, %cst_166 [1] : vector<4x16xf32> to vector<4xf32>
    %421 = vector.shape_cast %420 : vector<4xf32> to vector<4x1xf32>
    %c0_167 = arith.constant 0 : index
    %c14 = arith.constant 14 : index
    %422 = vector.load %arg3[%c0_167, %c14] : memref<8x128xf32, #tpu.memory_space<vmem>>, vector<4x1xf32>
    tpu.vector_store %arg3[%c0_167, %c14], %421 {strides = array<i32>} : memref<8x128xf32, #tpu.memory_space<vmem>>, vector<4x1xf32>,
    %cst_168 = arith.constant dense<0.000000e+00> : vector<1xf32>
    %423 = vector.multi_reduction <add>, %350, %cst_168 [1] : vector<1x16xf32> to vector<1xf32>
    %424 = vector.shape_cast %423 : vector<1xf32> to vector<1x1xf32>
    %c4_169 = arith.constant 4 : index
    %c8_170 = arith.constant 8 : index
    %425 = vector.load %arg3[%c4_169, %c8_170] : memref<8x128xf32, #tpu.memory_space<vmem>>, vector<1x1xf32>
    tpu.vector_store %arg3[%c4_169, %c8_170], %424 {strides = array<i32>} : memref<8x128xf32, #tpu.memory_space<vmem>>, vector<1x1xf32>,
    %426 = tpu.iota {dimensions = array<i32: 1>} : vector<1x128xi32>
    %cst_171 = arith.constant 0.000000e+00 : f32
    %427 = vector.broadcast %cst_171 : f32 to vector<1x128xf32>
    %c0_i32_172 = arith.constant 0 : i32
    %428 = vector.broadcast %c0_i32_172 : i32 to vector<1x128xi32>
    %429 = arith.cmpi eq, %426, %428 : vector<1x128xi32>
    %cst_173 = arith.constant 0.000000e+00 : f32
    %430 = vector.shape_cast %70 : vector<1x1xf32> to vector<1x1xf32>
    %431 = vector.broadcast %430 : vector<1x1xf32> to vector<1x128xf32>
    %432 = vector.broadcast %cst_173 : f32 to vector<1x128xf32>
    %433 = arith.select %429, %431, %432 : vector<1x128xi1>, vector<1x128xf32>
    %434 = arith.addf %427, %433 : vector<1x128xf32>
    %c1_i32_174 = arith.constant 1 : i32
    %435 = vector.broadcast %c1_i32_174 : i32 to vector<1x128xi32>
    %436 = arith.cmpi eq, %426, %435 : vector<1x128xi32>
    %cst_175 = arith.constant 0.000000e+00 : f32
    %437 = vector.shape_cast %122 : vector<1x1xf32> to vector<1x1xf32>
    %438 = vector.broadcast %437 : vector<1x1xf32> to vector<1x128xf32>
    %439 = vector.broadcast %cst_175 : f32 to vector<1x128xf32>
    %440 = arith.select %436, %438, %439 : vector<1x128xi1>, vector<1x128xf32>
    %441 = arith.addf %434, %440 : vector<1x128xf32>
    %c2_i32_176 = arith.constant 2 : i32
    %442 = vector.broadcast %c2_i32_176 : i32 to vector<1x128xi32>
    %443 = arith.cmpi eq, %426, %442 : vector<1x128xi32>
    %cst_177 = arith.constant 0.000000e+00 : f32
    %444 = vector.shape_cast %286 : vector<1x1xf32> to vector<1x1xf32>
    %445 = vector.broadcast %444 : vector<1x1xf32> to vector<1x128xf32>
    %446 = vector.broadcast %cst_177 : f32 to vector<1x128xf32>
    %447 = arith.select %443, %445, %446 : vector<1x128xi1>, vector<1x128xf32>
    %448 = arith.addf %441, %447 : vector<1x128xf32>
    %c3_i32_178 = arith.constant 3 : i32
    %449 = vector.broadcast %c3_i32_178 : i32 to vector<1x128xi32>
    %450 = arith.cmpi eq, %426, %449 : vector<1x128xi32>
    %cst_179 = arith.constant 0.000000e+00 : f32
    %451 = vector.shape_cast %338 : vector<1x1xf32> to vector<1x1xf32>
    %452 = vector.broadcast %451 : vector<1x1xf32> to vector<1x128xf32>
    %453 = vector.broadcast %cst_179 : f32 to vector<1x128xf32>
    %454 = arith.select %450, %452, %453 : vector<1x128xi1>, vector<1x128xf32>
    %455 = arith.addf %448, %454 : vector<1x128xf32>
    %c5_180 = arith.constant 5 : index
    %c0_181 = arith.constant 0 : index
    %456 = vector.load %arg3[%c5_180, %c0_181] : memref<8x128xf32, #tpu.memory_space<vmem>>, vector<1x128xf32>
    tpu.vector_store %arg3[%c5_180, %c0_181], %455 {strides = array<i32>} : memref<8x128xf32, #tpu.memory_space<vmem>>, vector<1x128xf32>,
    return
  }
}

</mosaic_0001>

<llo_original>
// kernel: tpu_custom_call.1
$region0: #{tpu_custom_call.1}
  #allocation0 [shape = 'u32[]', space=smem, size = 0x4, offset = 0x4, fixed_abs, tag = 'smem constant byte address 0x4 - core index']
  #allocation1 [shape = 'u32[144,128]{1,0:T(1,128)}', space=vmem, size = 0x12000, scoped, tag = 'internal scratch']
  #allocation2 [shape = 'f32[1,1]{1,0:T(1,128)S(6)}', space=smem, size = 0x200, scoped, tag = 'scoped memory for tpu_custom_call.1']
  %s0 = inlined_call_operand.vmem [shape: s32[4,2], index: 0, kind: input, shape index: {}]
  %s1 = inlined_call_operand.<no memory space> [shape: f32[1,1], index: 1, kind: input, shape index: {}]
  %s2 = inlined_call_operand.vmem [shape: f32[8,128], index: 2, kind: input, shape index: {}]
  %s3 = inlined_call_operand.hbm [shape: f32[8,128], index: 3, kind: output, shape index: {}]
  %s4 = sld [smem:[#allocation0]]
  $region26: #{tpu_custom_call.1} parent=0
    _
  %s6 = ssub.s32 1, %s4
  %s7 = scalar_select 0, %s6, %s4
  %8 = sst [smem:[#allocation2]] %s1
  $region1: #{tpu_custom_call.1} parent=0
    #allocation3 [shape = 'u8[2048]{0}', space=smem, size = 0x800, scoped, tag = 'input window, operand 0, single buffered']
    #allocation4 [shape = 's32[1]{0}', space=sflag, size = 0x4, scoped, tag = 'scoped memory for tpu_custom_call.1']
    #allocation5 [shape = 's32[1]{0}', space=sflag, size = 0x4, scoped, tag = 'scoped memory for tpu_custom_call.1']
    #allocation6 [shape = 'u8[4096]{0}', space=vmem, size = 0x1000, scoped, tag = 'output window, operand 0, single buffered']
    %9 = vsyncpa [#allocation5], 0
    %10 = vsyncpa [#allocation4], 0
    // Predicated region
    $region2: #{tpu_custom_call.1} parent=1 // pred_check
      _
    $region3: #{tpu_custom_call.1} parent=1 // pred_check_branch
      %12 = sbr.rel (0) target = $region5
    $region4: #{tpu_custom_call.1} parent=1 // pred_region
      %s14 = ssub.s32 64, 64
      %15 = vsyncadd [#allocation5], %s14
      %s17 = sshll.u32 %s0, 4
      %s18 = int_to_ptr.vmem [resolvable:$true] %s17
      %20 = dma.vmem_to_smem %s18, 64, [#allocation3], [#allocation5]
    $region5: #{tpu_custom_call.1} parent=1 // pred_fallthru
      _
    // Predicated region
    $region6: #{tpu_custom_call.1} parent=1 // pred_check
      _
    $region7: #{tpu_custom_call.1} parent=1 // pred_check_branch
      %22 = sbr.rel (0) target = $region9
    $region8: #{tpu_custom_call.1} parent=1 // pred_region
      _
    $region9: #{tpu_custom_call.1} parent=1 // pred_fallthru
      _
    // Predicated region
    $region10: #{tpu_custom_call.1} parent=1 // pred_check
      _
    $region11: #{tpu_custom_call.1} parent=1 // pred_check_branch
      %24 = sbr.rel (0) target = $region13
    $region12: #{tpu_custom_call.1} parent=1 // pred_region
      _
    $region13: #{tpu_custom_call.1} parent=1 // pred_fallthru
      _
    // Predicated region
    $region14: #{tpu_custom_call.1} parent=1 // pred_check
      _
    $region15: #{tpu_custom_call.1} parent=1 // pred_check_branch
      %26 = sbr.rel (0) target = $region17
    $region16: #{tpu_custom_call.1} parent=1 // pred_region
      %27 = dma.done [#allocation5], 64
    $region17: #{tpu_custom_call.1} parent=1 // pred_fallthru
      _
    %28 = sfence
    %29 = vst [vmem:[#allocation6] sm:$0xff] 0.0
    %s30 = sld [smem:[#allocation2]]
    %v31 = vld [vmem:[%s2] sm:$0xf]
    %v32 = vld [vmem:[%s2 + $0x4] sm:$0x1]
    %v33 = vlaneseq
    %v34 = vand.u32 %v33, 127
    %v35 = vand.u32 %v34, 1
    %v36 = vshra.s32 %v34, 1
    %v37 = vand.u32 %v36, 1
    %v38 = vadd.s32 %v35, %v37
    %v39 = vshra.s32 %v34, 2
    %v40 = vand.u32 %v39, 1
    %v41 = vadd.s32 %v38, %v40
    %v42 = vshra.s32 %v34, 3
    %v43 = vand.u32 %v42, 1
    %v44 = vadd.s32 %v41, %v43
    %v45 = vshra.s32 %v34, 4
    %v46 = vand.u32 %v45, 1
    %v47 = vadd.s32 %v44, %v46
    %s48 = sld [smem:[#allocation3]]
    %s49 = sld [smem:[#allocation3 + $0x1]]
    %v50 = vstv %s49
    %vm51 = vcmp.eq.s32.totalorder %v47, %v50
    %v52 = vsel %vm51, 1.0, 0.0
    %v53 = vstv %s48
    %vm54 = vcmp.eq.s32.totalorder %v34, %v53
    %v55 = vsel %vm54, 1.0, 0.0
    %v56 = vstv %s30
    %v57 = vmul.f32 %v31, %v56
    %59 = vset.pattern.permute.xlu0 48
    %60 = vperm.xlu0 %59, %v57
    %v61 = vpop.permute.xlu0 %60
    %v63 = vadd.f32 %v31, %v61
    %v64 = vtanh.pop %v63
    %66 = vset.pattern.permute.xlu0 49
    %67 = vperm.xlu0 %66, %v31
    %v68 = vpop.permute.xlu0 %67
    %v70 = vmul.f32 %v68, %v64
    %vm71 = vcmask 257024
    %v72 = vsel %vm71, %v70, 0.0
    %v73 = vrot.slane %v72, 4
    %v74 = vadd.f32 %v72, %v73
    %v75 = vrot.slane %v74, 2
    %v76 = vadd.f32 %v74, %v75
    %v77 = vrot.slane %v76, 1
    %v78 = vadd.f32 %v76, %v77
    %80 = vset.pattern.permute.xlu0 48
    %81 = vperm.xlu0 %80, %v32
    %v82 = vpop.permute.xlu0 %81
    %v84 = vadd.f32 %v82, %v78
    %v85 = vmul.f32 %v84, 1.442695
    %v86 = vpow.pop %v85
    %v87 = vmul.f32 %v52, %v86
    %vm88 = vcmask 253952
    %v89 = vsel %vm88, %v87, 0.0
    %90 = vadd.xlane.f32.xlu0 %v89
    %v91 = vpop.xlane.xlu0 %90
    %v92 = vmul.f32 %v55, %v86
    %v93 = vsel %vm88, %v92, 0.0
    %94 = vadd.xlane.f32.xlu0 %v93
    %v95 = vpop.xlane.xlu0 %94
    %v96 = vrcp.pop %v91
    %v97 = vmul.f32 1.0, %v96
    %v98 = vmul.f32 %v95, %v97
    %v99 = vmul.f32 %v52, %v84
    %v100 = vmul.f32 %v97, %v99
    %v101 = vsub.f32 %v55, %v100
    %v102 = vmul.f32 %v64, %v64
    %v103 = vsub.f32 1.0, %v102
    %v104 = vmul.f32 %v68, %v103
    %v105 = vlaneseq
    %v106 = vshrl.u32 %v105, 7
    %v107 = vsub.s32 0, %v106
    %v108 = vrot.slane %v101, %v107
    %v109 = vmul.f32 %v108, %v104
    %v110 = vadd.f32 %v101, 0.0
    %v111 = vmul.f32 %v108, %v64
    %v112 = vadd.f32 %v111, 0.0
    %v113 = vadd.f32 %v109, 0.0
    %v114 = vmul.f32 %v56, %v109
    %v115 = vadd.f32 %v114, 0.0
    %s116 = sld [smem:[#allocation3 + $0x80]]
    %s117 = sld [smem:[#allocation3 + $0x81]]
    %v118 = vstv %s117
    %vm119 = vcmp.eq.s32.totalorder %v47, %v118
    %v120 = vsel %vm119, 1.0, 0.0
    %v121 = vstv %s116
    %vm122 = vcmp.eq.s32.totalorder %v34, %v121
    %v123 = vsel %vm122, 1.0, 0.0
    %v124 = vlaneseq
    %v125 = vshrl.u32 %v124, 7
    %v126 = vsub.s32 0, %v125
    %v127 = vrot.slane %v98, %v126
    %v128 = vmul.f32 %v31, %v127
    %130 = vset.pattern.permute.xlu0 48
    %131 = vperm.xlu0 %130, %v128
    %v132 = vpop.permute.xlu0 %131
    %v134 = vadd.f32 %v31, %v132
    %v135 = vtanh.pop %v134
    %v136 = vmul.f32 %v68, %v135
    %v137 = vsel %vm71, %v136, 0.0
    %v138 = vrot.slane %v137, 4
    %v139 = vadd.f32 %v137, %v138
    %v140 = vrot.slane %v139, 2
    %v141 = vadd.f32 %v139, %v140
    %v142 = vrot.slane %v141, 1
    %v143 = vadd.f32 %v141, %v142
    %v144 = vadd.f32 %v82, %v143
    %v145 = vmul.f32 %v144, 1.442695
    %v146 = vpow.pop %v145
    %v147 = vmul.f32 %v120, %v146
    %v148 = vsel %vm88, %v147, 0.0
    %149 = vadd.xlane.f32.xlu0 %v148
    %v150 = vpop.xlane.xlu0 %149
    %v151 = vmul.f32 %v123, %v146
    %v152 = vsel %vm88, %v151, 0.0
    %153 = vadd.xlane.f32.xlu0 %v152
    %v154 = vpop.xlane.xlu0 %153
    %v155 = vrcp.pop %v150
    %v156 = vmul.f32 1.0, %v155
    %v157 = vmul.f32 %v154, %v156
    %v158 = vmul.f32 %v120, %v144
    %v159 = vmul.f32 %v156, %v158
    %v160 = vsub.f32 %v123, %v159
    %v161 = vmul.f32 %v135, %v135
    %v162 = vsub.f32 1.0, %v161
    %v163 = vmul.f32 %v68, %v162
    %v164 = vlaneseq
    %v165 = vshrl.u32 %v164, 7
    %v166 = vsub.s32 0, %v165
    %v167 = vrot.slane %v160, %v166
    %v168 = vmul.f32 %v167, %v163
    %v169 = vadd.f32 %v110, %v160
    %v170 = vmul.f32 %v167, %v135
    %v171 = vadd.f32 %v112, %v170
    %v172 = vadd.f32 %v113, %v168
    %v173 = vmul.f32 %v127, %v168
    %v174 = vadd.f32 %v115, %v173
    %v175 = vsel %vm71, %v174, 0.0
    %176 = vadd.xlane.f32.xlu0 %v175
    %v177 = vpop.xlane.xlu0 %176
    %vm178 = vcmask 3072
    %179 = vst.msk [vmem:[#allocation6] sm:$0xf] %vm178, %v177
    %vm180 = vcmp.gt.s32.totalorder %v46, 0
    %v181 = vsel %vm180, 1.0, 0.0
    %v182 = vmul.f32 %v172, %v181
    %v183 = vsel %vm71, %v182, 0.0
    %184 = vadd.xlane.f32.xlu0 %v183
    %v185 = vpop.xlane.xlu0 %184
    %vm186 = vcmask 11272
    %187 = vst.msk [vmem:[#allocation6] sm:$0xf] %vm186, %v185
    %vm188 = vcmp.gt.s32.totalorder %v43, 0
    %v189 = vsel %vm188, 1.0, 0.0
    %v190 = vmul.f32 %v172, %v189
    %v191 = vsel %vm71, %v190, 0.0
    %192 = vadd.xlane.f32.xlu0 %v191
    %v193 = vpop.xlane.xlu0 %192
    %vm194 = vcmask 19472
    %195 = vst.msk [vmem:[#allocation6] sm:$0xf] %vm194, %v193
    %vm196 = vcmp.gt.s32.totalorder %v40, 0
    %v197 = vsel %vm196, 1.0, 0.0
    %v198 = vmul.f32 %v172, %v197
    %v199 = vsel %vm71, %v198, 0.0
    %200 = vadd.xlane.f32.xlu0 %v199
    %v201 = vpop.xlane.xlu0 %200
    %vm202 = vcmask 27672
    %203 = vst.msk [vmem:[#allocation6] sm:$0xf] %vm202, %v201
    %vm204 = vcmp.gt.s32.totalorder %v37, 0
    %v205 = vsel %vm204, 1.0, 0.0
    %v206 = vmul.f32 %v172, %v205
    %v207 = vsel %vm71, %v206, 0.0
    %208 = vadd.xlane.f32.xlu0 %v207
    %v209 = vpop.xlane.xlu0 %208
    %vm210 = vcmask 35872
    %211 = vst.msk [vmem:[#allocation6] sm:$0xf] %vm210, %v209
    %vm212 = vcmp.gt.s32.totalorder %v35, 0
    %v213 = vsel %vm212, 1.0, 0.0
    %v214 = vmul.f32 %v172, %v213
    %v215 = vsel %vm71, %v214, 0.0
    %216 = vadd.xlane.f32.xlu0 %v215
    %v217 = vpop.xlane.xlu0 %216
    %vm218 = vcmask 44072
    %219 = vst.msk [vmem:[#allocation6] sm:$0xf] %vm218, %v217
    %v220 = vsel %vm71, %v172, 0.0
    %221 = vadd.xlane.f32.xlu0 %v220
    %v222 = vpop.xlane.xlu0 %221
    %vm223 = vcmask 52272
    %224 = vst.msk [vmem:[#allocation6] sm:$0xf] %vm223, %v222
    %v225 = vsel %vm71, %v171, 0.0
    %226 = vadd.xlane.f32.xlu0 %v225
    %v227 = vpop.xlane.xlu0 %226
    %vm228 = vcmask 60472
    %229 = vst.msk [vmem:[#allocation6] sm:$0xf] %vm228, %v227
    %v230 = vsel %vm88, %v169, 0.0
    %231 = vadd.xlane.f32.xlu0 %v230
    %v232 = vpop.xlane.xlu0 %231
    %vm233 = vcmask 0
    %234 = vst.msk [vmem:[#allocation6 + $0x4] sm:$0x1] %vm233, %v232
    %v235 = vld [vmem:[%s2] sm:$0xf]
    %v236 = vld [vmem:[%s2 + $0x4] sm:$0x1]
    %s237 = sld [smem:[#allocation3 + $0x100]]
    %s238 = sld [smem:[#allocation3 + $0x101]]
    %v239 = vstv %s238
    %vm240 = vcmp.eq.s32.totalorder %v44, %v239
    %v241 = vsel %vm240, 1.0, 0.0
    %v242 = vstv %s237
    %vm243 = vcmp.eq.s32.totalorder %v34, %v242
    %v244 = vsel %vm243, 1.0, 0.0
    %v245 = vlaneseq
    %v246 = vshrl.u32 %v245, 7
    %v247 = vsub.s32 0, %v246
    %v248 = vrot.slane %v157, %v247
    %v249 = vmul.f32 %v235, %v248
    %251 = vset.pattern.permute.xlu0 50
    %252 = vperm.xlu0 %251, %v249
    %v253 = vpop.permute.xlu0 %252
    %v255 = vadd.f32 %v235, %v253
    %v256 = vtanh.pop %v255
    %258 = vset.pattern.permute.xlu0 51
    %259 = vperm.xlu0 %258, %v235
    %v260 = vpop.permute.xlu0 %259
    %v262 = vmul.f32 %v260, %v256
    %vm263 = vcmask 388352
    %v264 = vsel %vm263, %v262, 0.0
    %v265 = vrot.slane %v264, 4
    %v266 = vadd.f32 %v264, %v265
    %v267 = vrot.slane %v266, 2
    %v268 = vadd.f32 %v266, %v267
    %v269 = vrot.slane %v268, 1
    %v270 = vadd.f32 %v268, %v269
    %272 = vset.pattern.permute.xlu0 50
    %273 = vperm.xlu0 %272, %v236
    %v274 = vpop.permute.xlu0 %273
    %v276 = vadd.f32 %v274, %v270
    %v277 = vmul.f32 %v276, 1.442695
    %v278 = vpow.pop %v277
    %280 = vrot.lane.b32.xlu0 %v278, 96
    %v281 = vpop.permute.xlu0 %280
    %v283 = vmul.f32 %v241, %v281
    %vm284 = vcmask 122880
    %v285 = vsel %vm284, %v283, 0.0
    %286 = vadd.xlane.f32.xlu0 %v285
    %v287 = vpop.xlane.xlu0 %286
    %v288 = vmul.f32 %v244, %v281
    %v289 = vsel %vm284, %v288, 0.0
    %290 = vadd.xlane.f32.xlu0 %v289
    %v291 = vpop.xlane.xlu0 %290
    %v292 = vrcp.pop %v287
    %v293 = vmul.f32 1.0, %v292
    %v294 = vmul.f32 %v291, %v293
    %296 = vrot.lane.b32.xlu0 %v276, 96
    %v297 = vpop.permute.xlu0 %296
    %v299 = vmul.f32 %v241, %v297
    %v300 = vmul.f32 %v293, %v299
    %v301 = vsub.f32 %v244, %v300
    %v302 = vmul.f32 %v256, %v256
    %v303 = vsub.f32 1.0, %v302
    %v304 = vmul.f32 %v260, %v303
    %v305 = vlaneseq
    %v306 = vshrl.u32 %v305, 7
    %v307 = vsub.s32 0, %v306
    %v308 = vrot.slane %v301, %v307
    %310 = vrot.lane.b32.xlu0 %v304, 96
    %v311 = vpop.permute.xlu0 %310
    %v313 = vmul.f32 %v308, %v311
    %v314 = vadd.f32 %v301, 0.0
    %316 = vrot.lane.b32.xlu0 %v256, 96
    %v317 = vpop.permute.xlu0 %316
    %v319 = vmul.f32 %v308, %v317
    %v320 = vadd.f32 %v319, 0.0
    %v321 = vadd.f32 %v313, 0.0
    %v322 = vmul.f32 %v248, %v313
    %v323 = vadd.f32 %v322, 0.0
    %s324 = sld [smem:[#allocation3 + $0x180]]
    %s325 = sld [smem:[#allocation3 + $0x181]]
    %v326 = vstv %s325
    %vm327 = vcmp.eq.s32.totalorder %v44, %v326
    %v328 = vsel %vm327, 1.0, 0.0
    %v329 = vstv %s324
    %vm330 = vcmp.eq.s32.totalorder %v34, %v329
    %v331 = vsel %vm330, 1.0, 0.0
    %v332 = vlaneseq
    %v333 = vshrl.u32 %v332, 7
    %v334 = vsub.s32 0, %v333
    %v335 = vrot.slane %v294, %v334
    %v336 = vmul.f32 %v235, %v335
    %338 = vset.pattern.permute.xlu0 50
    %339 = vperm.xlu0 %338, %v336
    %v340 = vpop.permute.xlu0 %339
    %v342 = vadd.f32 %v235, %v340
    %v343 = vtanh.pop %v342
    %v344 = vmul.f32 %v260, %v343
    %v345 = vsel %vm263, %v344, 0.0
    %v346 = vrot.slane %v345, 4
    %v347 = vadd.f32 %v345, %v346
    %v348 = vrot.slane %v347, 2
    %v349 = vadd.f32 %v347, %v348
    %v350 = vrot.slane %v349, 1
    %v351 = vadd.f32 %v349, %v350
    %v352 = vadd.f32 %v274, %v351
    %v353 = vmul.f32 %v352, 1.442695
    %v354 = vpow.pop %v353
    %356 = vrot.lane.b32.xlu0 %v354, 96
    %v357 = vpop.permute.xlu0 %356
    %v359 = vmul.f32 %v328, %v357
    %v360 = vsel %vm284, %v359, 0.0
    %361 = vadd.xlane.f32.xlu0 %v360
    %v362 = vpop.xlane.xlu0 %361
    %v363 = vmul.f32 %v331, %v357
    %v364 = vsel %vm284, %v363, 0.0
    %365 = vadd.xlane.f32.xlu0 %v364
    %v366 = vpop.xlane.xlu0 %365
    %v367 = vrcp.pop %v362
    %v368 = vmul.f32 1.0, %v367
    %v369 = vmul.f32 %v366, %v368
    %371 = vrot.lane.b32.xlu0 %v352, 96
    %v372 = vpop.permute.xlu0 %371
    %v374 = vmul.f32 %v328, %v372
    %v375 = vmul.f32 %v368, %v374
    %v376 = vsub.f32 %v331, %v375
    %v377 = vmul.f32 %v343, %v343
    %v378 = vsub.f32 1.0, %v377
    %v379 = vmul.f32 %v260, %v378
    %v380 = vlaneseq
    %v381 = vshrl.u32 %v380, 7
    %v382 = vsub.s32 0, %v381
    %v383 = vrot.slane %v376, %v382
    %385 = vrot.lane.b32.xlu0 %v379, 96
    %v386 = vpop.permute.xlu0 %385
    %v388 = vmul.f32 %v383, %v386
    %v389 = vadd.f32 %v314, %v376
    %391 = vrot.lane.b32.xlu0 %v343, 96
    %v392 = vpop.permute.xlu0 %391
    %v394 = vmul.f32 %v383, %v392
    %v395 = vadd.f32 %v320, %v394
    %v396 = vadd.f32 %v321, %v388
    %v397 = vmul.f32 %v335, %v388
    %v398 = vadd.f32 %v323, %v397
    %vm399 = vcmask 125952
    %v400 = vsel %vm399, %v398, 0.0
    %401 = vadd.xlane.f32.xlu0 %v400
    %v402 = vpop.xlane.xlu0 %401
    %vm403 = vcmask 68672
    %404 = vst.msk [vmem:[#allocation6] sm:$0xf] %vm403, %v402
    %v405 = vmul.f32 %v396, %v189
    %v406 = vsel %vm399, %v405, 0.0
    %407 = vadd.xlane.f32.xlu0 %v406
    %v408 = vpop.xlane.xlu0 %407
    %vm409 = vcmask 76872
    %410 = vst.msk [vmem:[#allocation6] sm:$0xf] %vm409, %v408
    %v411 = vmul.f32 %v396, %v197
    %v412 = vsel %vm399, %v411, 0.0
    %413 = vadd.xlane.f32.xlu0 %v412
    %v414 = vpop.xlane.xlu0 %413
    %vm415 = vcmask 85072
    %416 = vst.msk [vmem:[#allocation6] sm:$0xf] %vm415, %v414
    %v417 = vmul.f32 %v396, %v205
    %v418 = vsel %vm399, %v417, 0.0
    %419 = vadd.xlane.f32.xlu0 %v418
    %v420 = vpop.xlane.xlu0 %419
    %vm421 = vcmask 93272
    %422 = vst.msk [vmem:[#allocation6] sm:$0xf] %vm421, %v420
    %v423 = vmul.f32 %v396, %v213
    %v424 = vsel %vm399, %v423, 0.0
    %425 = vadd.xlane.f32.xlu0 %v424
    %v426 = vpop.xlane.xlu0 %425
    %vm427 = vcmask 101472
    %428 = vst.msk [vmem:[#allocation6] sm:$0xf] %vm427, %v426
    %v429 = vsel %vm399, %v396, 0.0
    %430 = vadd.xlane.f32.xlu0 %v429
    %v431 = vpop.xlane.xlu0 %430
    %vm432 = vcmask 109672
    %433 = vst.msk [vmem:[#allocation6] sm:$0xf] %vm432, %v431
    %v434 = vsel %vm399, %v395, 0.0
    %435 = vadd.xlane.f32.xlu0 %v434
    %v436 = vpop.xlane.xlu0 %435
    %vm437 = vcmask 117872
    %438 = vst.msk [vmem:[#allocation6] sm:$0xf] %vm437, %v436
    %v439 = vsel %vm284, %v389, 0.0
    %440 = vadd.xlane.f32.xlu0 %v439
    %v441 = vpop.xlane.xlu0 %440
    %vm442 = vcmask 65600
    %443 = vst.msk [vmem:[#allocation6 + $0x4] sm:$0x1] %vm442, %v441
    %vm444 = vcmp.eq.s32.totalorder %v34, 0
    %v445 = vsel %vm444, %v98, 0.0
    %v446 = vadd.f32 %v445, 0.0
    %vm447 = vcmp.eq.s32.totalorder %v34, 1
    %v448 = vsel %vm447, %v157, 0.0
    %v449 = vadd.f32 %v446, %v448
    %vm450 = vcmp.eq.s32.totalorder %v34, 2
    %v451 = vsel %vm450, %v294, 0.0
    %v452 = vadd.f32 %v449, %v451
    %vm453 = vcmp.eq.s32.totalorder %v34, 3
    %v454 = vsel %vm453, %v369, 0.0
    %v455 = vadd.f32 %v452, %v454
    %456 = vst [vmem:[#allocation6 + $0x5] sm:$0x1] %v455
    // Predicated region
    $region18: #{tpu_custom_call.1} parent=1 // pred_check
      _
    $region19: #{tpu_custom_call.1} parent=1 // pred_check_branch
      %458 = sbr.rel (0) target = $region21
    $region20: #{tpu_custom_call.1} parent=1 // pred_region
      %s460 = ssub.s32 128, 128
      %461 = vsyncadd [#allocation4], %s460
      %s463 = sshll.u32 [#allocation6], 4
      %s464 = int_to_ptr.vmem [resolvable:$true] %s463
      %466 = dma.vmem_to_hbm [thread:$0]  %s464, 128, %s3, [#allocation4]
    $region21: #{tpu_custom_call.1} parent=1 // pred_fallthru
      _
    // Predicated region
    $region22: #{tpu_custom_call.1} parent=1 // pred_check
      _
    $region23: #{tpu_custom_call.1} parent=1 // pred_check_branch
      %468 = sbr.rel (0) target = $region25
    $region24: #{tpu_custom_call.1} parent=1 // pred_region
      %469 = dma.done [#allocation4], 128
    $region25: #{tpu_custom_call.1} parent=1 // pred_fallthru
      _
    %470 = vsyncpa [#allocation4], 1
    %471 = vsyncpa [#allocation5], 1

</llo_original>
